<compile_context>
chip_gen: v7x
topology: tpu7x:2x2x1
jax: 0.10.0
libtpu: 0.0.40
codegen_flags: <defaults>
</compile_context>

<pallas_src>
import functools

import jax
import jax.numpy as jnp
from jax import lax
from jax.experimental import pallas as pl
from jax.experimental.pallas import tpu as pltpu

EPS = 1e-5
NSPLIT = 2  # megacore split of the reduce grid (v7x); harmless elsewhere


def _round_up(x, m):
    return ((x + m - 1) // m) * m


def _round_down(x, m):
    return (x // m) * m


def _vmem_budget_bytes():
    """~3/4 of physical VMEM: 96 MiB on v5e/v6e (128 MiB), 48 MiB on v7x (64 MiB)."""
    cap = None
    try:
        cap = getattr(pltpu.get_tpu_info(), "vmem_capacity_bytes", None)
    except Exception:
        cap = None
    if not cap:
        cap = 64 << 20  # conservative default = v7x per-core VMEM
    return (int(cap) * 3) // 4


# ---------------------------------------------------------------------------
# Kernels
# ---------------------------------------------------------------------------
def _fused_bn_kernel(x_ref, g_ref, b_ref, o_ref, *, n, eps):
    """Whole tensor resident in VMEM: mean, centered variance, normalize."""
    x = x_ref[...].astype(jnp.float32)                  # (B, C, HW)
    mean = jnp.sum(x) / n
    d = x - mean
    var = jnp.sum(d * d) / (n - 1.0)                    # unbiased, no cancellation
    rstd = lax.rsqrt(var + eps)
    scale = g_ref[...].astype(jnp.float32) * rstd       # (out_B, C, 1)
    o_ref[...] = (d * scale + b_ref[...].astype(jnp.float32)).astype(o_ref.dtype)


def _reduce_kernel(pivot_ref, x_ref, sum_ref, sq_ref, *, steps, tr, rows, masked):
    """Accumulate pivot-shifted sum / sum-of-squares of a (tr, LAST) tile into
    the (8, LAST) f32 accumulator owned by this megacore split.  Only VPU adds
    per step; the single cross-lane collapse happens in the wrapper."""
    s = pl.program_id(1)

    @pl.when(s == 0)
    def _():
        sum_ref[...] = jnp.zeros_like(sum_ref)
        sq_ref[...] = jnp.zeros_like(sq_ref)

    x = x_ref[...].astype(jnp.float32) - pivot_ref[0]   # (tr, LAST)
    if masked:  # static: only emitted when the row tiling is ragged
        start = (pl.program_id(0) * steps + s) * tr
        valid = rows - start                            # <= 0 for surplus blocks
        rid = lax.broadcasted_iota(jnp.int32, x.shape, 0)
        x = jnp.where(rid < valid, x, 0.0)
    xr = x.reshape(tr // 8, 8, x.shape[1])              # regroups whole (8,128) tiles
    sum_ref[...] += jnp.sum(xr, axis=0)
    sq_ref[...] += jnp.sum(xr * xr, axis=0)


def _apply_kernel(x_ref, scale_ref, shift_ref, o_ref):
    """out = x * scale + shift, scale/shift per (batch, channel) row."""
    x = x_ref[...].astype(jnp.float32)
    o_ref[...] = (x * scale_ref[...] + shift_ref[...]).astype(o_ref.dtype)


# ---------------------------------------------------------------------------
# Pass 1 helper: tiled global sum / sum-of-squares (no extra HBM copy)
# ---------------------------------------------------------------------------
def _global_sum_sumsq(feature, n, B, C, hw, pivot, vmem_limit):
    reduce_tile_bytes = min(vmem_limit // 4, 16 << 20)  # 16 MiB v5e/v6e, 12 MiB v7x

    # Pick a free (bitcast) 2-D view, lane-dense when possible.
    xv = None
    for last in (1024, 512, 256, 128):
        if n % last == 0:
            xv = feature.reshape(n // last, last)
            break
    if xv is None:
        if B * C >= 8 and 2 * 8 * hw * 4 <= vmem_limit:
            xv = feature.reshape(B * C, hw)             # full-width rows, row-masked
        else:
            # TODO(synk): rare ragged corner (n % 128 != 0 and B*C < 8 or huge
            # rows).  Pad once with the pivot value (exactly zero after the
            # shift) -- correct but pays one extra HBM copy.
            pad = _round_up(n, 1024) - n
            flat = feature.reshape(-1).astype(jnp.float32)
            flat = lax.pad(flat, pivot[0], [(0, pad, 0)])
            xv = flat.reshape(-1, 1024)

    rows, last = xv.shape
    tr_cap = max(8, _round_down(reduce_tile_bytes // (last * 4), 8))
    # Aim for >= 3 steps per megacore split so double-buffering overlaps.
    tr = max(8, min(tr_cap, _round_up(pl.cdiv(rows, NSPLIT * 3), 8)))
    n_blocks = pl.cdiv(rows, tr)
    steps = pl.cdiv(n_blocks, NSPLIT)
    masked = not (rows % tr == 0 and n_blocks % NSPLIT == 0)

    if masked:
        x_spec = pl.BlockSpec(
            (tr, last),
            lambda c, s: (jnp.minimum(c * steps + s, n_blocks - 1), 0))
    else:
        x_spec = pl.BlockSpec((tr, last), lambda c, s: (c * steps + s, 0))

    part_shape = jax.ShapeDtypeStruct((NSPLIT, 8, last), jnp.float32)
    part_spec = pl.BlockSpec((None, 8, last), lambda c, s: (c, 0, 0))

    s_part, q_part = pl.pallas_call(
        functools.partial(_reduce_kernel, steps=steps, tr=tr, rows=rows,
                          masked=masked),
        out_shape=(part_shape, part_shape),
        grid=(NSPLIT, steps),
        in_specs=[pl.BlockSpec(memory_space=pltpu.MemorySpace.SMEM), x_spec],
        out_specs=(part_spec, part_spec),
        compiler_params=pltpu.CompilerParams(
            dimension_semantics=("parallel", "arbitrary"),
            vmem_limit_bytes=vmem_limit),
    )(pivot, xv)
    return jnp.sum(s_part), jnp.sum(q_part)


# ---------------------------------------------------------------------------
# Wrapper
# ---------------------------------------------------------------------------
def bn_forward(feature, gammas, betas, eps=EPS, *, force_tiled=False):
    B, C, H, W = feature.shape
    out_B, g_C = gammas.shape
    if g_C != C:
        raise ValueError(f"gammas/betas channels {g_C} != feature channels {C}")
    if B not in (1, out_B):
        raise ValueError(
            f"batch {B} cannot broadcast against the ({out_B}, C) parameters "
            f"(the PyTorch module requires batch == 1 or {out_B})")

    hw = H * W
    n = B * C * hw
    nf = float(n)
    vmem_limit = _vmem_budget_bytes()

    g3 = gammas.astype(jnp.float32).reshape(out_B, C, 1)
    b3 = betas.astype(jnp.float32).reshape(out_B, C, 1)

    # ---------------- fused single-pass path --------------------------------
    in_f32 = B * C * hw * 4
    out_f32 = out_B * C * hw * 4
    fused_ok = (2 * (in_f32 + out_f32) + (1 << 20)) <= vmem_limit
    use_fused = (fused_ok and not force_tiled) or n < 8192
    if use_fused:
        out3 = pl.pallas_call(
            functools.partial(_fused_bn_kernel, n=nf, eps=eps),
            out_shape=jax.ShapeDtypeStruct((out_B, C, hw), feature.dtype),
            in_specs=[pl.BlockSpec(memory_space=pltpu.MemorySpace.VMEM)] * 3,
            out_specs=pl.BlockSpec(memory_space=pltpu.MemorySpace.VMEM),
            compiler_params=pltpu.CompilerParams(vmem_limit_bytes=vmem_limit),
        )(feature.reshape(B, C, hw), g3, b3)
        return out3.reshape(out_B, C, H, W)

    # ---------------- pass 1: tiled global reduction (no pad copy) ----------
    pivot = feature.reshape(-1)[:1].astype(jnp.float32)      # (1,) sampled shift
    s1, s2 = _global_sum_sumsq(feature, n, B, C, hw, pivot, vmem_limit)
    mean = pivot[0] + s1 / nf
    var = (s2 - s1 * s1 / nf) / (nf - 1.0)                   # unbiased, shifted
    rstd = lax.rsqrt(var + eps)

    # Per-(batch, channel) affine folded into one FMA: out = x*scale + shift.
    scale = g3[..., 0] * rstd                                # (out_B, C)
    shift = b3[..., 0] - mean * scale                        # (out_B, C)

    # ---------------- pass 2: tiled normalize + affine ----------------------
    apply_tile_bytes = min(16 << 20, max(4 << 20, vmem_limit // 6))
    col_bytes = hw * 4

    if B == out_B:
        # Flattened (B*C, hw) view: tiles never need to align with C.
        R2 = out_B * C
        x2 = feature.reshape(R2, hw)
        if 8 * col_bytes <= apply_tile_bytes:
            tw = hw                                          # full rows (contiguous DMA)
            tr = _round_down(apply_tile_bytes // col_bytes, 8)
            tr = max(8, min(tr, _round_down(R2, 8))) if R2 >= 8 else R2
        else:
            tr = 8                                           # chunk hw, 128-aligned lanes
            tw = max(128, _round_down(apply_tile_bytes // (8 * 4), 128))
        out2 = pl.pallas_call(
            _apply_kernel,
            out_shape=jax.ShapeDtypeStruct((R2, hw), feature.dtype),
            grid=(pl.cdiv(R2, tr), pl.cdiv(hw, tw)),
            in_specs=[pl.BlockSpec((tr, tw), lambda i, j: (i, j)),
                      pl.BlockSpec((tr, 1), lambda i, j: (i, 0)),
                      pl.BlockSpec((tr, 1), lambda i, j: (i, 0))],
            out_specs=pl.BlockSpec((tr, tw), lambda i, j: (i, j)),
            compiler_params=pltpu.CompilerParams(
                dimension_semantics=("parallel", "parallel"),
                vmem_limit_bytes=vmem_limit),
        )(x2, scale.reshape(R2, 1), shift.reshape(R2, 1))
        return out2.reshape(out_B, C, H, W)

    # B == 1: broadcast via the index_map (never materialized in HBM).  The
    # batch axis is the innermost grid axis so the x block index is constant
    # across consecutive steps and Pallas skips the redundant x DMA.
    x3 = feature.reshape(1, C, hw)
    if C * col_bytes <= apply_tile_bytes:
        tc, tw = C, hw
    elif 8 * col_bytes <= apply_tile_bytes:
        tc = max(8, min(_round_down(apply_tile_bytes // col_bytes, 8),
                        _round_down(C, 8)))
        tw = hw
    else:
        tc = C if C < 8 else 8
        tw = max(128, _round_down(apply_tile_bytes // (tc * 4), 128))
    out3 = pl.pallas_call(
        _apply_kernel,
        out_shape=jax.ShapeDtypeStruct((out_B, C, hw), feature.dtype),
        grid=(pl.cdiv(C, tc), pl.cdiv(hw, tw), out_B),
        in_specs=[pl.BlockSpec((1, tc, tw), lambda i, j, b: (0, i, j)),
                  pl.BlockSpec((1, tc, 1), lambda i, j, b: (b, i, 0)),
                  pl.BlockSpec((1, tc, 1), lambda i, j, b: (b, i, 0))],
        out_specs=pl.BlockSpec((1, tc, tw), lambda i, j, b: (b, i, j)),
        compiler_params=pltpu.CompilerParams(
            dimension_semantics=("parallel", "parallel", "arbitrary"),
            vmem_limit_bytes=vmem_limit),
    )(x3, scale.reshape(out_B, C, 1), shift.reshape(out_B, C, 1))
    return out3.reshape(out_B, C, H, W)


# ---------------------------------------------------------------------------
# Pure-JAX reference mirroring the PyTorch forward
# ---------------------------------------------------------------------------
def bn_reference(feature, gammas, betas, eps=EPS):
    mean = jnp.mean(feature)
    var = jnp.var(feature, ddof=1)           # torch.var is unbiased by default
    g = gammas[:, :, None, None]
    b = betas[:, :, None, None]
    return (feature - mean) / jnp.sqrt(var + eps) * g + b


if __name__ == "__main__":
    key = jax.random.PRNGKey(0)
    keys = jax.random.split(key, 8)

    def check(feature, gammas, betas, tol, **kw):
        out = jax.block_until_ready(bn_forward(feature, gammas, betas, **kw))
        ref = bn_reference(feature, gammas, betas)
        assert out.shape == ref.shape
        err = float(jnp.max(jnp.abs(out - ref)))
        assert err <= tol, err

    # --- fused single-pass path ---------------------------------------------
    C = 4
    g = jax.random.normal(keys[1], (32, C), dtype=jnp.float32)
    b = jax.random.normal(keys[2], (32, C), dtype=jnp.float32)
    check(jax.random.normal(keys[0], (32, C, 8, 8), dtype=jnp.float32), g, b, 1e-4)
    check(jax.random.normal(keys[3], (1, C, 8, 8), dtype=jnp.float32), g, b, 1e-4)

    # --- tiled two-pass path (forced so the test stays small) ----------------
    C2 = 16
    g2 = jax.random.normal(keys[4], (32, C2), dtype=jnp.float32)
    b2 = jax.random.normal(keys[5], (32, C2), dtype=jnp.float32)
    # lane-dense reduce view, unmasked tiling, B == 32 flattened apply
    check(jax.random.normal(keys[0], (32, C2, 24, 24), dtype=jnp.float32),
          g2, b2, 2e-3, force_tiled=True)
    # masked reduce (ragged row tail), channel count not a multiple of 8
    C3 = 5
    g3_ = jax.random.normal(keys[6], (32, C3), dtype=jnp.float32)
    b3_ = jax.random.normal(keys[7], (32, C3), dtype=jnp.float32)
    check(jax.random.normal(keys[3], (32, C3, 24, 24), dtype=jnp.float32),
          g3_, b3_, 2e-3, force_tiled=True)
    # B == 1 broadcast apply with the batch axis innermost in the grid
    check(jax.random.normal(keys[0], (1, C2, 40, 40), dtype=jnp.float32),
          g2, b2, 2e-3, force_tiled=True)

    print("KERNEL_OK")
</pallas_src>

<mosaic_0001>
module attributes {stable_mosaic.version = 11 : i64} {
  func.func @_fused_bn_kernel(%arg0: memref<32x4x64xf32, #tpu.memory_space<vmem>>, %arg1: memref<32x4x1xf32, #tpu.memory_space<vmem>>, %arg2: memref<32x4x1xf32, #tpu.memory_space<vmem>>, %arg3: memref<32x4x64xf32, #tpu.memory_space<vmem>>) attributes {dimension_semantics = [], scalar_prefetch = 0 : i64, scratch_operands = 0 : i64, tpu.core_type = #tpu.core_type<tc>} {
    %c0 = arith.constant 0 : index
    %c0_0 = arith.constant 0 : index
    %c0_1 = arith.constant 0 : index
    %0 = vector.load %arg0[%c0, %c0_0, %c0_1] : memref<32x4x64xf32, #tpu.memory_space<vmem>>, vector<32x4x64xf32>
    %1 = vector.shape_cast %0 : vector<32x4x64xf32> to vector<1x32x4x64xf32>
    %cst = arith.constant dense<0.000000e+00> : vector<1xf32>
    %2 = vector.multi_reduction <add>, %1, %cst [1, 2, 3] : vector<1x32x4x64xf32> to vector<1xf32>
    %3 = vector.shape_cast %2 : vector<1xf32> to vector<1x1x1x1xf32>
    %4 = vector.extract %3[0, 0, 0, 0] : f32 from vector<1x1x1x1xf32>
    %cst_2 = arith.constant 8.192000e+03 : f32
    %5 = arith.divf %4, %cst_2 : f32
    %6 = vector.broadcast %5 : f32 to vector<32x4x64xf32>
    %7 = arith.subf %0, %6 : vector<32x4x64xf32>
    %8 = arith.mulf %7, %7 : vector<32x4x64xf32>
    %9 = vector.shape_cast %8 : vector<32x4x64xf32> to vector<1x32x4x64xf32>
    %cst_3 = arith.constant dense<0.000000e+00> : vector<1xf32>
    %10 = vector.multi_reduction <add>, %9, %cst_3 [1, 2, 3] : vector<1x32x4x64xf32> to vector<1xf32>
    %11 = vector.shape_cast %10 : vector<1xf32> to vector<1x1x1x1xf32>
    %12 = vector.extract %11[0, 0, 0, 0] : f32 from vector<1x1x1x1xf32>
    %cst_4 = arith.constant 8.191000e+03 : f32
    %13 = arith.divf %12, %cst_4 : f32
    %cst_5 = arith.constant 9.99999974E-6 : f32
    %14 = arith.addf %13, %cst_5 : f32
    %15 = math.rsqrt %14 : f32
    %c0_6 = arith.constant 0 : index
    %c0_7 = arith.constant 0 : index
    %c0_8 = arith.constant 0 : index
    %16 = vector.load %arg1[%c0_6, %c0_7, %c0_8] : memref<32x4x1xf32, #tpu.memory_space<vmem>>, vector<32x4x1xf32>
    %17 = vector.broadcast %15 : f32 to vector<32x4x1xf32>
    %18 = arith.mulf %16, %17 : vector<32x4x1xf32>
    %19 = vector.broadcast %18 : vector<32x4x1xf32> to vector<32x4x64xf32>
    %20 = arith.mulf %7, %19 : vector<32x4x64xf32>
    %c0_9 = arith.constant 0 : index
    %c0_10 = arith.constant 0 : index
    %c0_11 = arith.constant 0 : index
    %21 = vector.load %arg2[%c0_9, %c0_10, %c0_11] : memref<32x4x1xf32, #tpu.memory_space<vmem>>, vector<32x4x1xf32>
    %22 = vector.broadcast %21 : vector<32x4x1xf32> to vector<32x4x64xf32>
    %23 = arith.addf %20, %22 : vector<32x4x64xf32>
    %c0_12 = arith.constant 0 : index
    %c0_13 = arith.constant 0 : index
    %c0_14 = arith.constant 0 : index
    %24 = vector.load %arg3[%c0_12, %c0_13, %c0_14] : memref<32x4x64xf32, #tpu.memory_space<vmem>>, vector<32x4x64xf32>
    tpu.vector_store %arg3[%c0_12, %c0_13, %c0_14], %23 {strides = array<i32>} : memref<32x4x64xf32, #tpu.memory_space<vmem>>, vector<32x4x64xf32>,
    return
  }
}

</mosaic_0001>

<llo_original>
// kernel: tpu_custom_call.1
$region0: #{tpu_custom_call.1}
  #allocation0 [shape = 'u32[]', space=smem, size = 0x4, offset = 0x4, fixed_abs, tag = 'smem constant byte address 0x4 - core index']
  #allocation1 [shape = 'u32[144,128]{1,0:T(1,128)}', space=vmem, size = 0x12000, scoped, tag = 'internal scratch']
  %s0 = inlined_call_operand.vmem [shape: f32[32,4,64], index: 0, kind: input, shape index: {}]
  %s1 = inlined_call_operand.vmem [shape: f32[32,4,1], index: 1, kind: input, shape index: {}]
  %s2 = inlined_call_operand.vmem [shape: f32[32,4,1], index: 2, kind: input, shape index: {}]
  %s3 = inlined_call_operand.hbm [shape: f32[32,4,64], index: 3, kind: output, shape index: {}]
  %s4 = sld [smem:[#allocation0]]
  $region22: #{tpu_custom_call.1} parent=0
    _
  %s6 = ssub.s32 1, %s4
  %s7 = scalar_select 0, %s6, %s4
  $region1: #{tpu_custom_call.1} parent=0
    #allocation2 [shape = 'u8[65536]{0}', space=vmem, size = 0x10000, scoped, tag = 'output window, operand 0, single buffered']
    #allocation3 [shape = 's32[1]{0}', space=sflag, size = 0x4, scoped, tag = 'scoped memory for tpu_custom_call.1']
    %8 = vsyncpa [#allocation3], 0
    // Predicated region
    $region2: #{tpu_custom_call.1} parent=1 // pred_check
      _
    $region3: #{tpu_custom_call.1} parent=1 // pred_check_branch
      %10 = sbr.rel (0) target = $region5
    $region4: #{tpu_custom_call.1} parent=1 // pred_region
      _
    $region5: #{tpu_custom_call.1} parent=1 // pred_fallthru
      _
    // Predicated region
    $region6: #{tpu_custom_call.1} parent=1 // pred_check
      _
    $region7: #{tpu_custom_call.1} parent=1 // pred_check_branch
      %12 = sbr.rel (0) target = $region9
    $region8: #{tpu_custom_call.1} parent=1 // pred_region
      _
    $region9: #{tpu_custom_call.1} parent=1 // pred_fallthru
      _
    // Predicated region
    $region10: #{tpu_custom_call.1} parent=1 // pred_check
      _
    $region11: #{tpu_custom_call.1} parent=1 // pred_check_branch
      %14 = sbr.rel (0) target = $region13
    $region12: #{tpu_custom_call.1} parent=1 // pred_region
      _
    $region13: #{tpu_custom_call.1} parent=1 // pred_fallthru
      _
    %v15 = vld [vmem:[%s0] sm:$0xf]
    %v16 = vld [vmem:[%s0 + $0x4] sm:$0xf]
    %v17 = vld [vmem:[%s0 + $0x8] sm:$0xf]
    %v18 = vld [vmem:[%s0 + $0xc] sm:$0xf]
    %v19 = vld [vmem:[%s0 + $0x10] sm:$0xf]
    %v20 = vld [vmem:[%s0 + $0x14] sm:$0xf]
    %v21 = vld [vmem:[%s0 + $0x18] sm:$0xf]
    %v22 = vld [vmem:[%s0 + $0x1c] sm:$0xf]
    %v23 = vld [vmem:[%s0 + $0x20] sm:$0xf]
    %v24 = vld [vmem:[%s0 + $0x24] sm:$0xf]
    %v25 = vld [vmem:[%s0 + $0x28] sm:$0xf]
    %v26 = vld [vmem:[%s0 + $0x2c] sm:$0xf]
    %v27 = vld [vmem:[%s0 + $0x30] sm:$0xf]
    %v28 = vld [vmem:[%s0 + $0x34] sm:$0xf]
    %v29 = vld [vmem:[%s0 + $0x38] sm:$0xf]
    %v30 = vld [vmem:[%s0 + $0x3c] sm:$0xf]
    %v31 = vld [vmem:[%s0 + $0x40] sm:$0xf]
    %v32 = vld [vmem:[%s0 + $0x44] sm:$0xf]
    %v33 = vld [vmem:[%s0 + $0x48] sm:$0xf]
    %v34 = vld [vmem:[%s0 + $0x4c] sm:$0xf]
    %v35 = vld [vmem:[%s0 + $0x50] sm:$0xf]
    %v36 = vld [vmem:[%s0 + $0x54] sm:$0xf]
    %v37 = vld [vmem:[%s0 + $0x58] sm:$0xf]
    %v38 = vld [vmem:[%s0 + $0x5c] sm:$0xf]
    %v39 = vld [vmem:[%s0 + $0x60] sm:$0xf]
    %v40 = vld [vmem:[%s0 + $0x64] sm:$0xf]
    %v41 = vld [vmem:[%s0 + $0x68] sm:$0xf]
    %v42 = vld [vmem:[%s0 + $0x6c] sm:$0xf]
    %v43 = vld [vmem:[%s0 + $0x70] sm:$0xf]
    %v44 = vld [vmem:[%s0 + $0x74] sm:$0xf]
    %v45 = vld [vmem:[%s0 + $0x78] sm:$0xf]
    %v46 = vld [vmem:[%s0 + $0x7c] sm:$0xf]
    %vm47 = vcmask 519168
    %v48 = vsel %vm47, %v15, 0.0
    %v49 = vsel %vm47, %v16, 0.0
    %v50 = vadd.f32 %v48, %v49
    %v51 = vsel %vm47, %v17, 0.0
    %v52 = vadd.f32 %v50, %v51
    %v53 = vsel %vm47, %v18, 0.0
    %v54 = vadd.f32 %v52, %v53
    %v55 = vsel %vm47, %v19, 0.0
    %v56 = vadd.f32 %v54, %v55
    %v57 = vsel %vm47, %v20, 0.0
    %v58 = vadd.f32 %v56, %v57
    %v59 = vsel %vm47, %v21, 0.0
    %v60 = vadd.f32 %v58, %v59
    %v61 = vsel %vm47, %v22, 0.0
    %v62 = vadd.f32 %v60, %v61
    %v63 = vsel %vm47, %v23, 0.0
    %v64 = vadd.f32 %v62, %v63
    %v65 = vsel %vm47, %v24, 0.0
    %v66 = vadd.f32 %v64, %v65
    %v67 = vsel %vm47, %v25, 0.0
    %v68 = vadd.f32 %v66, %v67
    %v69 = vsel %vm47, %v26, 0.0
    %v70 = vadd.f32 %v68, %v69
    %v71 = vsel %vm47, %v27, 0.0
    %v72 = vadd.f32 %v70, %v71
    %v73 = vsel %vm47, %v28, 0.0
    %v74 = vadd.f32 %v72, %v73
    %v75 = vsel %vm47, %v29, 0.0
    %v76 = vadd.f32 %v74, %v75
    %v77 = vsel %vm47, %v30, 0.0
    %v78 = vadd.f32 %v76, %v77
    %v79 = vsel %vm47, %v31, 0.0
    %v80 = vadd.f32 %v78, %v79
    %v81 = vsel %vm47, %v32, 0.0
    %v82 = vadd.f32 %v80, %v81
    %v83 = vsel %vm47, %v33, 0.0
    %v84 = vadd.f32 %v82, %v83
    %v85 = vsel %vm47, %v34, 0.0
    %v86 = vadd.f32 %v84, %v85
    %v87 = vsel %vm47, %v35, 0.0
    %v88 = vadd.f32 %v86, %v87
    %v89 = vsel %vm47, %v36, 0.0
    %v90 = vadd.f32 %v88, %v89
    %v91 = vsel %vm47, %v37, 0.0
    %v92 = vadd.f32 %v90, %v91
    %v93 = vsel %vm47, %v38, 0.0
    %v94 = vadd.f32 %v92, %v93
    %v95 = vsel %vm47, %v39, 0.0
    %v96 = vadd.f32 %v94, %v95
    %v97 = vsel %vm47, %v40, 0.0
    %v98 = vadd.f32 %v96, %v97
    %v99 = vsel %vm47, %v41, 0.0
    %v100 = vadd.f32 %v98, %v99
    %v101 = vsel %vm47, %v42, 0.0
    %v102 = vadd.f32 %v100, %v101
    %v103 = vsel %vm47, %v43, 0.0
    %v104 = vadd.f32 %v102, %v103
    %v105 = vsel %vm47, %v44, 0.0
    %v106 = vadd.f32 %v104, %v105
    %v107 = vsel %vm47, %v45, 0.0
    %v108 = vadd.f32 %v106, %v107
    %v109 = vsel %vm47, %v46, 0.0
    %v110 = vadd.f32 %v108, %v109
    %111 = vadd.xlane.f32.xlu0 %v110
    %v112 = vpop.xlane.xlu0 %111
    %v113 = vrot.slane %v112, 4
    %v114 = vadd.f32 %v112, %v113
    %v115 = vrot.slane %v114, 2
    %v116 = vadd.f32 %v114, %v115
    %v117 = vrot.slane %v116, 1
    %v118 = vadd.f32 %v116, %v117
    %s119 = vtos %v118
    %v120 = vrcp.pop 8192.0
    %s121 = vtos %v120
    %s122 = smul.f32 %s119, %s121
    %v123 = vstv %s122
    %v124 = vsub.f32 %v15, %v123
    %v125 = vsub.f32 %v16, %v123
    %v126 = vsub.f32 %v17, %v123
    %v127 = vsub.f32 %v18, %v123
    %v128 = vsub.f32 %v19, %v123
    %v129 = vsub.f32 %v20, %v123
    %v130 = vsub.f32 %v21, %v123
    %v131 = vsub.f32 %v22, %v123
    %v132 = vsub.f32 %v23, %v123
    %v133 = vsub.f32 %v24, %v123
    %v134 = vsub.f32 %v25, %v123
    %v135 = vsub.f32 %v26, %v123
    %v136 = vsub.f32 %v27, %v123
    %v137 = vsub.f32 %v28, %v123
    %v138 = vsub.f32 %v29, %v123
    %v139 = vsub.f32 %v30, %v123
    %v140 = vsub.f32 %v31, %v123
    %v141 = vsub.f32 %v32, %v123
    %v142 = vsub.f32 %v33, %v123
    %v143 = vsub.f32 %v34, %v123
    %v144 = vsub.f32 %v35, %v123
    %v145 = vsub.f32 %v36, %v123
    %v146 = vsub.f32 %v37, %v123
    %v147 = vsub.f32 %v38, %v123
    %v148 = vsub.f32 %v39, %v123
    %v149 = vsub.f32 %v40, %v123
    %v150 = vsub.f32 %v41, %v123
    %v151 = vsub.f32 %v42, %v123
    %v152 = vsub.f32 %v43, %v123
    %v153 = vsub.f32 %v44, %v123
    %v154 = vsub.f32 %v45, %v123
    %v155 = vsub.f32 %v46, %v123
    %v156 = vmul.f32 %v124, %v124
    %v157 = vmul.f32 %v125, %v125
    %v158 = vmul.f32 %v126, %v126
    %v159 = vmul.f32 %v127, %v127
    %v160 = vmul.f32 %v128, %v128
    %v161 = vmul.f32 %v129, %v129
    %v162 = vmul.f32 %v130, %v130
    %v163 = vmul.f32 %v131, %v131
    %v164 = vmul.f32 %v132, %v132
    %v165 = vmul.f32 %v133, %v133
    %v166 = vmul.f32 %v134, %v134
    %v167 = vmul.f32 %v135, %v135
    %v168 = vmul.f32 %v136, %v136
    %v169 = vmul.f32 %v137, %v137
    %v170 = vmul.f32 %v138, %v138
    %v171 = vmul.f32 %v139, %v139
    %v172 = vmul.f32 %v140, %v140
    %v173 = vmul.f32 %v141, %v141
    %v174 = vmul.f32 %v142, %v142
    %v175 = vmul.f32 %v143, %v143
    %v176 = vmul.f32 %v144, %v144
    %v177 = vmul.f32 %v145, %v145
    %v178 = vmul.f32 %v146, %v146
    %v179 = vmul.f32 %v147, %v147
    %v180 = vmul.f32 %v148, %v148
    %v181 = vmul.f32 %v149, %v149
    %v182 = vmul.f32 %v150, %v150
    %v183 = vmul.f32 %v151, %v151
    %v184 = vmul.f32 %v152, %v152
    %v185 = vmul.f32 %v153, %v153
    %v186 = vmul.f32 %v154, %v154
    %v187 = vmul.f32 %v155, %v155
    %v188 = vsel %vm47, %v156, 0.0
    %v189 = vsel %vm47, %v157, 0.0
    %v190 = vadd.f32 %v188, %v189
    %v191 = vsel %vm47, %v158, 0.0
    %v192 = vadd.f32 %v190, %v191
    %v193 = vsel %vm47, %v159, 0.0
    %v194 = vadd.f32 %v192, %v193
    %v195 = vsel %vm47, %v160, 0.0
    %v196 = vadd.f32 %v194, %v195
    %v197 = vsel %vm47, %v161, 0.0
    %v198 = vadd.f32 %v196, %v197
    %v199 = vsel %vm47, %v162, 0.0
    %v200 = vadd.f32 %v198, %v199
    %v201 = vsel %vm47, %v163, 0.0
    %v202 = vadd.f32 %v200, %v201
    %v203 = vsel %vm47, %v164, 0.0
    %v204 = vadd.f32 %v202, %v203
    %v205 = vsel %vm47, %v165, 0.0
    %v206 = vadd.f32 %v204, %v205
    %v207 = vsel %vm47, %v166, 0.0
    %v208 = vadd.f32 %v206, %v207
    %v209 = vsel %vm47, %v167, 0.0
    %v210 = vadd.f32 %v208, %v209
    %v211 = vsel %vm47, %v168, 0.0
    %v212 = vadd.f32 %v210, %v211
    %v213 = vsel %vm47, %v169, 0.0
    %v214 = vadd.f32 %v212, %v213
    %v215 = vsel %vm47, %v170, 0.0
    %v216 = vadd.f32 %v214, %v215
    %v217 = vsel %vm47, %v171, 0.0
    %v218 = vadd.f32 %v216, %v217
    %v219 = vsel %vm47, %v172, 0.0
    %v220 = vadd.f32 %v218, %v219
    %v221 = vsel %vm47, %v173, 0.0
    %v222 = vadd.f32 %v220, %v221
    %v223 = vsel %vm47, %v174, 0.0
    %v224 = vadd.f32 %v222, %v223
    %v225 = vsel %vm47, %v175, 0.0
    %v226 = vadd.f32 %v224, %v225
    %v227 = vsel %vm47, %v176, 0.0
    %v228 = vadd.f32 %v226, %v227
    %v229 = vsel %vm47, %v177, 0.0
    %v230 = vadd.f32 %v228, %v229
    %v231 = vsel %vm47, %v178, 0.0
    %v232 = vadd.f32 %v230, %v231
    %v233 = vsel %vm47, %v179, 0.0
    %v234 = vadd.f32 %v232, %v233
    %v235 = vsel %vm47, %v180, 0.0
    %v236 = vadd.f32 %v234, %v235
    %v237 = vsel %vm47, %v181, 0.0
    %v238 = vadd.f32 %v236, %v237
    %v239 = vsel %vm47, %v182, 0.0
    %v240 = vadd.f32 %v238, %v239
    %v241 = vsel %vm47, %v183, 0.0
    %v242 = vadd.f32 %v240, %v241
    %v243 = vsel %vm47, %v184, 0.0
    %v244 = vadd.f32 %v242, %v243
    %v245 = vsel %vm47, %v185, 0.0
    %v246 = vadd.f32 %v244, %v245
    %v247 = vsel %vm47, %v186, 0.0
    %v248 = vadd.f32 %v246, %v247
    %v249 = vsel %vm47, %v187, 0.0
    %v250 = vadd.f32 %v248, %v249
    %251 = vadd.xlane.f32.xlu0 %v250
    %v252 = vpop.xlane.xlu0 %251
    %v253 = vrot.slane %v252, 4
    %v254 = vadd.f32 %v252, %v253
    %v255 = vrot.slane %v254, 2
    %v256 = vadd.f32 %v254, %v255
    %v257 = vrot.slane %v256, 1
    %v258 = vadd.f32 %v256, %v257
    %s259 = vtos %v258
    %v260 = vrcp.pop 8191.0
    %s261 = vtos %v260
    %s262 = smul.f32 %s259, %s261
    %s263 = sadd.f32 %s262, 1e-05
    %v264 = vstv %s263
    %v265 = vrsqrt.pop %v264
    %s266 = vtos %v265
    %v267 = vld [vmem:[%s1] sm:$0xf]
    %v268 = vld [vmem:[%s1 + $0x4] sm:$0xf]
    %v269 = vld [vmem:[%s1 + $0x8] sm:$0xf]
    %v270 = vld [vmem:[%s1 + $0xc] sm:$0xf]
    %v271 = vld [vmem:[%s1 + $0x10] sm:$0xf]
    %v272 = vld [vmem:[%s1 + $0x14] sm:$0xf]
    %v273 = vld [vmem:[%s1 + $0x18] sm:$0xf]
    %v274 = vld [vmem:[%s1 + $0x1c] sm:$0xf]
    %v275 = vld [vmem:[%s1 + $0x20] sm:$0xf]
    %v276 = vld [vmem:[%s1 + $0x24] sm:$0xf]
    %v277 = vld [vmem:[%s1 + $0x28] sm:$0xf]
    %v278 = vld [vmem:[%s1 + $0x2c] sm:$0xf]
    %v279 = vld [vmem:[%s1 + $0x30] sm:$0xf]
    %v280 = vld [vmem:[%s1 + $0x34] sm:$0xf]
    %v281 = vld [vmem:[%s1 + $0x38] sm:$0xf]
    %v282 = vld [vmem:[%s1 + $0x3c] sm:$0xf]
    %v283 = vld [vmem:[%s1 + $0x40] sm:$0xf]
    %v284 = vld [vmem:[%s1 + $0x44] sm:$0xf]
    %v285 = vld [vmem:[%s1 + $0x48] sm:$0xf]
    %v286 = vld [vmem:[%s1 + $0x4c] sm:$0xf]
    %v287 = vld [vmem:[%s1 + $0x50] sm:$0xf]
    %v288 = vld [vmem:[%s1 + $0x54] sm:$0xf]
    %v289 = vld [vmem:[%s1 + $0x58] sm:$0xf]
    %v290 = vld [vmem:[%s1 + $0x5c] sm:$0xf]
    %v291 = vld [vmem:[%s1 + $0x60] sm:$0xf]
    %v292 = vld [vmem:[%s1 + $0x64] sm:$0xf]
    %v293 = vld [vmem:[%s1 + $0x68] sm:$0xf]
    %v294 = vld [vmem:[%s1 + $0x6c] sm:$0xf]
    %v295 = vld [vmem:[%s1 + $0x70] sm:$0xf]
    %v296 = vld [vmem:[%s1 + $0x74] sm:$0xf]
    %v297 = vld [vmem:[%s1 + $0x78] sm:$0xf]
    %v298 = vld [vmem:[%s1 + $0x7c] sm:$0xf]
    %v299 = vstv %s266
    %v300 = vmul.f32 %v267, %v299
    %v301 = vmul.f32 %v268, %v299
    %v302 = vmul.f32 %v269, %v299
    %v303 = vmul.f32 %v270, %v299
    %v304 = vmul.f32 %v271, %v299
    %v305 = vmul.f32 %v272, %v299
    %v306 = vmul.f32 %v273, %v299
    %v307 = vmul.f32 %v274, %v299
    %v308 = vmul.f32 %v275, %v299
    %v309 = vmul.f32 %v276, %v299
    %v310 = vmul.f32 %v277, %v299
    %v311 = vmul.f32 %v278, %v299
    %v312 = vmul.f32 %v279, %v299
    %v313 = vmul.f32 %v280, %v299
    %v314 = vmul.f32 %v281, %v299
    %v315 = vmul.f32 %v282, %v299
    %v316 = vmul.f32 %v283, %v299
    %v317 = vmul.f32 %v284, %v299
    %v318 = vmul.f32 %v285, %v299
    %v319 = vmul.f32 %v286, %v299
    %v320 = vmul.f32 %v287, %v299
    %v321 = vmul.f32 %v288, %v299
    %v322 = vmul.f32 %v289, %v299
    %v323 = vmul.f32 %v290, %v299
    %v324 = vmul.f32 %v291, %v299
    %v325 = vmul.f32 %v292, %v299
    %v326 = vmul.f32 %v293, %v299
    %v327 = vmul.f32 %v294, %v299
    %v328 = vmul.f32 %v295, %v299
    %v329 = vmul.f32 %v296, %v299
    %v330 = vmul.f32 %v297, %v299
    %v331 = vmul.f32 %v298, %v299
    %333 = vset.pattern.permute.xlu0 0
    %334 = vperm.xlu0 %333, %v300
    %v335 = vpop.permute.xlu0 %334
    %338 = vset.pattern.permute.xlu0 0
    %339 = vperm.xlu0 %338, %v301
    %v340 = vpop.permute.xlu0 %339
    %343 = vset.pattern.permute.xlu0 0
    %344 = vperm.xlu0 %343, %v302
    %v345 = vpop.permute.xlu0 %344
    %348 = vset.pattern.permute.xlu0 0
    %349 = vperm.xlu0 %348, %v303
    %v350 = vpop.permute.xlu0 %349
    %353 = vset.pattern.permute.xlu0 0
    %354 = vperm.xlu0 %353, %v304
    %v355 = vpop.permute.xlu0 %354
    %358 = vset.pattern.permute.xlu0 0
    %359 = vperm.xlu0 %358, %v305
    %v360 = vpop.permute.xlu0 %359
    %363 = vset.pattern.permute.xlu0 0
    %364 = vperm.xlu0 %363, %v306
    %v365 = vpop.permute.xlu0 %364
    %368 = vset.pattern.permute.xlu0 0
    %369 = vperm.xlu0 %368, %v307
    %v370 = vpop.permute.xlu0 %369
    %373 = vset.pattern.permute.xlu0 0
    %374 = vperm.xlu0 %373, %v308
    %v375 = vpop.permute.xlu0 %374
    %378 = vset.pattern.permute.xlu0 0
    %379 = vperm.xlu0 %378, %v309
    %v380 = vpop.permute.xlu0 %379
    %383 = vset.pattern.permute.xlu0 0
    %384 = vperm.xlu0 %383, %v310
    %v385 = vpop.permute.xlu0 %384
    %388 = vset.pattern.permute.xlu0 0
    %389 = vperm.xlu0 %388, %v311
    %v390 = vpop.permute.xlu0 %389
    %393 = vset.pattern.permute.xlu0 0
    %394 = vperm.xlu0 %393, %v312
    %v395 = vpop.permute.xlu0 %394
    %398 = vset.pattern.permute.xlu0 0
    %399 = vperm.xlu0 %398, %v313
    %v400 = vpop.permute.xlu0 %399
    %403 = vset.pattern.permute.xlu0 0
    %404 = vperm.xlu0 %403, %v314
    %v405 = vpop.permute.xlu0 %404
    %408 = vset.pattern.permute.xlu0 0
    %409 = vperm.xlu0 %408, %v315
    %v410 = vpop.permute.xlu0 %409
    %413 = vset.pattern.permute.xlu0 0
    %414 = vperm.xlu0 %413, %v316
    %v415 = vpop.permute.xlu0 %414
    %418 = vset.pattern.permute.xlu0 0
    %419 = vperm.xlu0 %418, %v317
    %v420 = vpop.permute.xlu0 %419
    %423 = vset.pattern.permute.xlu0 0
    %424 = vperm.xlu0 %423, %v318
    %v425 = vpop.permute.xlu0 %424
    %428 = vset.pattern.permute.xlu0 0
    %429 = vperm.xlu0 %428, %v319
    %v430 = vpop.permute.xlu0 %429
    %433 = vset.pattern.permute.xlu0 0
    %434 = vperm.xlu0 %433, %v320
    %v435 = vpop.permute.xlu0 %434
    %438 = vset.pattern.permute.xlu0 0
    %439 = vperm.xlu0 %438, %v321
    %v440 = vpop.permute.xlu0 %439
    %443 = vset.pattern.permute.xlu0 0
    %444 = vperm.xlu0 %443, %v322
    %v445 = vpop.permute.xlu0 %444
    %448 = vset.pattern.permute.xlu0 0
    %449 = vperm.xlu0 %448, %v323
    %v450 = vpop.permute.xlu0 %449
    %453 = vset.pattern.permute.xlu0 0
    %454 = vperm.xlu0 %453, %v324
    %v455 = vpop.permute.xlu0 %454
    %458 = vset.pattern.permute.xlu0 0
    %459 = vperm.xlu0 %458, %v325
    %v460 = vpop.permute.xlu0 %459
    %463 = vset.pattern.permute.xlu0 0
    %464 = vperm.xlu0 %463, %v326
    %v465 = vpop.permute.xlu0 %464
    %468 = vset.pattern.permute.xlu0 0
    %469 = vperm.xlu0 %468, %v327
    %v470 = vpop.permute.xlu0 %469
    %473 = vset.pattern.permute.xlu0 0
    %474 = vperm.xlu0 %473, %v328
    %v475 = vpop.permute.xlu0 %474
    %478 = vset.pattern.permute.xlu0 0
    %479 = vperm.xlu0 %478, %v329
    %v480 = vpop.permute.xlu0 %479
    %483 = vset.pattern.permute.xlu0 0
    %484 = vperm.xlu0 %483, %v330
    %v485 = vpop.permute.xlu0 %484
    %488 = vset.pattern.permute.xlu0 0
    %489 = vperm.xlu0 %488, %v331
    %v490 = vpop.permute.xlu0 %489
    %v492 = vmul.f32 %v124, %v335
    %v493 = vmul.f32 %v125, %v340
    %v494 = vmul.f32 %v126, %v345
    %v495 = vmul.f32 %v127, %v350
    %v496 = vmul.f32 %v128, %v355
    %v497 = vmul.f32 %v129, %v360
    %v498 = vmul.f32 %v130, %v365
    %v499 = vmul.f32 %v131, %v370
    %v500 = vmul.f32 %v132, %v375
    %v501 = vmul.f32 %v133, %v380
    %v502 = vmul.f32 %v134, %v385
    %v503 = vmul.f32 %v135, %v390
    %v504 = vmul.f32 %v136, %v395
    %v505 = vmul.f32 %v137, %v400
    %v506 = vmul.f32 %v138, %v405
    %v507 = vmul.f32 %v139, %v410
    %v508 = vmul.f32 %v140, %v415
    %v509 = vmul.f32 %v141, %v420
    %v510 = vmul.f32 %v142, %v425
    %v511 = vmul.f32 %v143, %v430
    %v512 = vmul.f32 %v144, %v435
    %v513 = vmul.f32 %v145, %v440
    %v514 = vmul.f32 %v146, %v445
    %v515 = vmul.f32 %v147, %v450
    %v516 = vmul.f32 %v148, %v455
    %v517 = vmul.f32 %v149, %v460
    %v518 = vmul.f32 %v150, %v465
    %v519 = vmul.f32 %v151, %v470
    %v520 = vmul.f32 %v152, %v475
    %v521 = vmul.f32 %v153, %v480
    %v522 = vmul.f32 %v154, %v485
    %v523 = vmul.f32 %v155, %v490
    %v524 = vld [vmem:[%s2] sm:$0xf]
    %v525 = vld [vmem:[%s2 + $0x4] sm:$0xf]
    %v526 = vld [vmem:[%s2 + $0x8] sm:$0xf]
    %v527 = vld [vmem:[%s2 + $0xc] sm:$0xf]
    %v528 = vld [vmem:[%s2 + $0x10] sm:$0xf]
    %v529 = vld [vmem:[%s2 + $0x14] sm:$0xf]
    %v530 = vld [vmem:[%s2 + $0x18] sm:$0xf]
    %v531 = vld [vmem:[%s2 + $0x1c] sm:$0xf]
    %v532 = vld [vmem:[%s2 + $0x20] sm:$0xf]
    %v533 = vld [vmem:[%s2 + $0x24] sm:$0xf]
    %v534 = vld [vmem:[%s2 + $0x28] sm:$0xf]
    %v535 = vld [vmem:[%s2 + $0x2c] sm:$0xf]
    %v536 = vld [vmem:[%s2 + $0x30] sm:$0xf]
    %v537 = vld [vmem:[%s2 + $0x34] sm:$0xf]
    %v538 = vld [vmem:[%s2 + $0x38] sm:$0xf]
    %v539 = vld [vmem:[%s2 + $0x3c] sm:$0xf]
    %v540 = vld [vmem:[%s2 + $0x40] sm:$0xf]
    %v541 = vld [vmem:[%s2 + $0x44] sm:$0xf]
    %v542 = vld [vmem:[%s2 + $0x48] sm:$0xf]
    %v543 = vld [vmem:[%s2 + $0x4c] sm:$0xf]
    %v544 = vld [vmem:[%s2 + $0x50] sm:$0xf]
    %v545 = vld [vmem:[%s2 + $0x54] sm:$0xf]
    %v546 = vld [vmem:[%s2 + $0x58] sm:$0xf]
    %v547 = vld [vmem:[%s2 + $0x5c] sm:$0xf]
    %v548 = vld [vmem:[%s2 + $0x60] sm:$0xf]
    %v549 = vld [vmem:[%s2 + $0x64] sm:$0xf]
    %v550 = vld [vmem:[%s2 + $0x68] sm:$0xf]
    %v551 = vld [vmem:[%s2 + $0x6c] sm:$0xf]
    %v552 = vld [vmem:[%s2 + $0x70] sm:$0xf]
    %v553 = vld [vmem:[%s2 + $0x74] sm:$0xf]
    %v554 = vld [vmem:[%s2 + $0x78] sm:$0xf]
    %v555 = vld [vmem:[%s2 + $0x7c] sm:$0xf]
    %557 = vset.pattern.permute.xlu0 0
    %558 = vperm.xlu0 %557, %v524
    %v559 = vpop.permute.xlu0 %558
    %562 = vset.pattern.permute.xlu0 0
    %563 = vperm.xlu0 %562, %v525
    %v564 = vpop.permute.xlu0 %563
    %567 = vset.pattern.permute.xlu0 0
    %568 = vperm.xlu0 %567, %v526
    %v569 = vpop.permute.xlu0 %568
    %572 = vset.pattern.permute.xlu0 0
    %573 = vperm.xlu0 %572, %v527
    %v574 = vpop.permute.xlu0 %573
    %577 = vset.pattern.permute.xlu0 0
    %578 = vperm.xlu0 %577, %v528
    %v579 = vpop.permute.xlu0 %578
    %582 = vset.pattern.permute.xlu0 0
    %583 = vperm.xlu0 %582, %v529
    %v584 = vpop.permute.xlu0 %583
    %587 = vset.pattern.permute.xlu0 0
    %588 = vperm.xlu0 %587, %v530
    %v589 = vpop.permute.xlu0 %588
    %592 = vset.pattern.permute.xlu0 0
    %593 = vperm.xlu0 %592, %v531
    %v594 = vpop.permute.xlu0 %593
    %597 = vset.pattern.permute.xlu0 0
    %598 = vperm.xlu0 %597, %v532
    %v599 = vpop.permute.xlu0 %598
    %602 = vset.pattern.permute.xlu0 0
    %603 = vperm.xlu0 %602, %v533
    %v604 = vpop.permute.xlu0 %603
    %607 = vset.pattern.permute.xlu0 0
    %608 = vperm.xlu0 %607, %v534
    %v609 = vpop.permute.xlu0 %608
    %612 = vset.pattern.permute.xlu0 0
    %613 = vperm.xlu0 %612, %v535
    %v614 = vpop.permute.xlu0 %613
    %617 = vset.pattern.permute.xlu0 0
    %618 = vperm.xlu0 %617, %v536
    %v619 = vpop.permute.xlu0 %618
    %622 = vset.pattern.permute.xlu0 0
    %623 = vperm.xlu0 %622, %v537
    %v624 = vpop.permute.xlu0 %623
    %627 = vset.pattern.permute.xlu0 0
    %628 = vperm.xlu0 %627, %v538
    %v629 = vpop.permute.xlu0 %628
    %632 = vset.pattern.permute.xlu0 0
    %633 = vperm.xlu0 %632, %v539
    %v634 = vpop.permute.xlu0 %633
    %637 = vset.pattern.permute.xlu0 0
    %638 = vperm.xlu0 %637, %v540
    %v639 = vpop.permute.xlu0 %638
    %642 = vset.pattern.permute.xlu0 0
    %643 = vperm.xlu0 %642, %v541
    %v644 = vpop.permute.xlu0 %643
    %647 = vset.pattern.permute.xlu0 0
    %648 = vperm.xlu0 %647, %v542
    %v649 = vpop.permute.xlu0 %648
    %652 = vset.pattern.permute.xlu0 0
    %653 = vperm.xlu0 %652, %v543
    %v654 = vpop.permute.xlu0 %653
    %657 = vset.pattern.permute.xlu0 0
    %658 = vperm.xlu0 %657, %v544
    %v659 = vpop.permute.xlu0 %658
    %662 = vset.pattern.permute.xlu0 0
    %663 = vperm.xlu0 %662, %v545
    %v664 = vpop.permute.xlu0 %663
    %667 = vset.pattern.permute.xlu0 0
    %668 = vperm.xlu0 %667, %v546
    %v669 = vpop.permute.xlu0 %668
    %672 = vset.pattern.permute.xlu0 0
    %673 = vperm.xlu0 %672, %v547
    %v674 = vpop.permute.xlu0 %673
    %677 = vset.pattern.permute.xlu0 0
    %678 = vperm.xlu0 %677, %v548
    %v679 = vpop.permute.xlu0 %678
    %682 = vset.pattern.permute.xlu0 0
    %683 = vperm.xlu0 %682, %v549
    %v684 = vpop.permute.xlu0 %683
    %687 = vset.pattern.permute.xlu0 0
    %688 = vperm.xlu0 %687, %v550
    %v689 = vpop.permute.xlu0 %688
    %692 = vset.pattern.permute.xlu0 0
    %693 = vperm.xlu0 %692, %v551
    %v694 = vpop.permute.xlu0 %693
    %697 = vset.pattern.permute.xlu0 0
    %698 = vperm.xlu0 %697, %v552
    %v699 = vpop.permute.xlu0 %698
    %702 = vset.pattern.permute.xlu0 0
    %703 = vperm.xlu0 %702, %v553
    %v704 = vpop.permute.xlu0 %703
    %707 = vset.pattern.permute.xlu0 0
    %708 = vperm.xlu0 %707, %v554
    %v709 = vpop.permute.xlu0 %708
    %712 = vset.pattern.permute.xlu0 0
    %713 = vperm.xlu0 %712, %v555
    %v714 = vpop.permute.xlu0 %713
    %v716 = vadd.f32 %v492, %v559
    %v717 = vadd.f32 %v493, %v564
    %v718 = vadd.f32 %v494, %v569
    %v719 = vadd.f32 %v495, %v574
    %v720 = vadd.f32 %v496, %v579
    %v721 = vadd.f32 %v497, %v584
    %v722 = vadd.f32 %v498, %v589
    %v723 = vadd.f32 %v499, %v594
    %v724 = vadd.f32 %v500, %v599
    %v725 = vadd.f32 %v501, %v604
    %v726 = vadd.f32 %v502, %v609
    %v727 = vadd.f32 %v503, %v614
    %v728 = vadd.f32 %v504, %v619
    %v729 = vadd.f32 %v505, %v624
    %v730 = vadd.f32 %v506, %v629
    %v731 = vadd.f32 %v507, %v634
    %v732 = vadd.f32 %v508, %v639
    %v733 = vadd.f32 %v509, %v644
    %v734 = vadd.f32 %v510, %v649
    %v735 = vadd.f32 %v511, %v654
    %v736 = vadd.f32 %v512, %v659
    %v737 = vadd.f32 %v513, %v664
    %v738 = vadd.f32 %v514, %v669
    %v739 = vadd.f32 %v515, %v674
    %v740 = vadd.f32 %v516, %v679
    %v741 = vadd.f32 %v517, %v684
    %v742 = vadd.f32 %v518, %v689
    %v743 = vadd.f32 %v519, %v694
    %v744 = vadd.f32 %v520, %v699
    %v745 = vadd.f32 %v521, %v704
    %v746 = vadd.f32 %v522, %v709
    %v747 = vadd.f32 %v523, %v714
    %748 = vst.msk [vmem:[#allocation2] sm:$0xf] %vm47, %v716
    %749 = vst.msk [vmem:[#allocation2 + $0x4] sm:$0xf] %vm47, %v717
    %750 = vst.msk [vmem:[#allocation2 + $0x8] sm:$0xf] %vm47, %v718
    %751 = vst.msk [vmem:[#allocation2 + $0xc] sm:$0xf] %vm47, %v719
    %752 = vst.msk [vmem:[#allocation2 + $0x10] sm:$0xf] %vm47, %v720
    %753 = vst.msk [vmem:[#allocation2 + $0x14] sm:$0xf] %vm47, %v721
    %754 = vst.msk [vmem:[#allocation2 + $0x18] sm:$0xf] %vm47, %v722
    %755 = vst.msk [vmem:[#allocation2 + $0x1c] sm:$0xf] %vm47, %v723
    %756 = vst.msk [vmem:[#allocation2 + $0x20] sm:$0xf] %vm47, %v724
    %757 = vst.msk [vmem:[#allocation2 + $0x24] sm:$0xf] %vm47, %v725
    %758 = vst.msk [vmem:[#allocation2 + $0x28] sm:$0xf] %vm47, %v726
    %759 = vst.msk [vmem:[#allocation2 + $0x2c] sm:$0xf] %vm47, %v727
    %760 = vst.msk [vmem:[#allocation2 + $0x30] sm:$0xf] %vm47, %v728
    %761 = vst.msk [vmem:[#allocation2 + $0x34] sm:$0xf] %vm47, %v729
    %762 = vst.msk [vmem:[#allocation2 + $0x38] sm:$0xf] %vm47, %v730
    %763 = vst.msk [vmem:[#allocation2 + $0x3c] sm:$0xf] %vm47, %v731
    %764 = vst.msk [vmem:[#allocation2 + $0x40] sm:$0xf] %vm47, %v732
    %765 = vst.msk [vmem:[#allocation2 + $0x44] sm:$0xf] %vm47, %v733
    %766 = vst.msk [vmem:[#allocation2 + $0x48] sm:$0xf] %vm47, %v734
    %767 = vst.msk [vmem:[#allocation2 + $0x4c] sm:$0xf] %vm47, %v735
    %768 = vst.msk [vmem:[#allocation2 + $0x50] sm:$0xf] %vm47, %v736
    %769 = vst.msk [vmem:[#allocation2 + $0x54] sm:$0xf] %vm47, %v737
    %770 = vst.msk [vmem:[#allocation2 + $0x58] sm:$0xf] %vm47, %v738
    %771 = vst.msk [vmem:[#allocation2 + $0x5c] sm:$0xf] %vm47, %v739
    %772 = vst.msk [vmem:[#allocation2 + $0x60] sm:$0xf] %vm47, %v740
    %773 = vst.msk [vmem:[#allocation2 + $0x64] sm:$0xf] %vm47, %v741
    %774 = vst.msk [vmem:[#allocation2 + $0x68] sm:$0xf] %vm47, %v742
    %775 = vst.msk [vmem:[#allocation2 + $0x6c] sm:$0xf] %vm47, %v743
    %776 = vst.msk [vmem:[#allocation2 + $0x70] sm:$0xf] %vm47, %v744
    %777 = vst.msk [vmem:[#allocation2 + $0x74] sm:$0xf] %vm47, %v745
    %778 = vst.msk [vmem:[#allocation2 + $0x78] sm:$0xf] %vm47, %v746
    %779 = vst.msk [vmem:[#allocation2 + $0x7c] sm:$0xf] %vm47, %v747
    // Predicated region
    $region14: #{tpu_custom_call.1} parent=1 // pred_check
      _
    $region15: #{tpu_custom_call.1} parent=1 // pred_check_branch
      %781 = sbr.rel (0) target = $region17
    $region16: #{tpu_custom_call.1} parent=1 // pred_region
      %s783 = ssub.s32 2048, 2048
      %784 = vsyncadd [#allocation3], %s783
      %s785 = sshll.u32 [#allocation2], 4
      %s786 = int_to_ptr.vmem [resolvable:$true] %s785
      %791 = dma.vmem_to_hbm [thread:$0]  %s786, 2048, %s3, [#allocation3], 64, 64, 4
    $region17: #{tpu_custom_call.1} parent=1 // pred_fallthru
      _
    // Predicated region
    $region18: #{tpu_custom_call.1} parent=1 // pred_check
      _
    $region19: #{tpu_custom_call.1} parent=1 // pred_check_branch
      %793 = sbr.rel (0) target = $region21
    $region20: #{tpu_custom_call.1} parent=1 // pred_region
      %794 = dma.done [#allocation3], 2048
    $region21: #{tpu_custom_call.1} parent=1 // pred_fallthru
      _
    %795 = vsyncpa [#allocation3], 1

</llo_original>
